<compile_context>
chip_gen: v7x
topology: tpu7x:2x2x1
jax: 0.10.0
libtpu: 0.0.40
codegen_flags: <defaults>
</compile_context>

<pallas_src>
import jax
import jax.numpy as jnp
from jax.experimental import pallas as pl
from jax.experimental.pallas import tpu as pltpu


def _leaky_relu(x, slope=0.2):
    # max(x, slope*x) == LeakyReLU(slope) for 0 < slope < 1 (vmul + vmax).
    return jnp.maximum(x, slope * x)


def _disc_kernel(x_ref,
                 w1_ref, b1_ref,
                 w2_ref, b2_ref,
                 w3_ref, b3_ref,
                 w4_ref, b4_ref,
                 o_ref):
    cdt = w1_ref.dtype  # MXU-input dtype (f32 or bf16); accumulation is f32.

    # Cast the x tile in-kernel (VPU) instead of a wrapper-side HBM pass.
    x = x_ref[...].astype(cdt)

    # Layer 1: (tb, D) @ (D, 512) + (1, 512)
    h = jnp.dot(x, w1_ref[...], preferred_element_type=jnp.float32)
    h = _leaky_relu(h + b1_ref[...]).astype(cdt)   # keep spills narrow
    # Dropout(0.3): identity in eval mode.

    # Layer 2: (tb, 512) @ (512, 256) + (1, 256)
    h = jnp.dot(h, w2_ref[...], preferred_element_type=jnp.float32)
    h = _leaky_relu(h + b2_ref[...]).astype(cdt)

    # Layer 3: (tb, 256) @ (256, 128) + (1, 128)
    h = jnp.dot(h, w3_ref[...], preferred_element_type=jnp.float32)
    h = _leaky_relu(h + b3_ref[...]).astype(cdt)

    # Layer 4: natural-form matmul (tb, 128) @ (128, 1) -> (tb, 1).
    logits = jnp.dot(h, w4_ref[...], preferred_element_type=jnp.float32)
    logits = logits + b4_ref[...]
    # Sigmoid: exp on the EUP; exact reciprocal for parity with torch.sigmoid.
    o_ref[...] = pl.reciprocal(1.0 + jnp.exp(-logits), approx=False).astype(o_ref.dtype)


def _round_up(v, m):
    return ((v + m - 1) // m) * m


def _choose_batch_tile(B, tb_max):
    """Batch tile: 8-aligned; >=2 balanced tiles for mid-size batches (v7x megacore)."""
    if B <= 8:
        return B                    # tiny batch: one block equal to the full dim
    b8 = _round_up(B, 8)
    if b8 <= 128:
        return b8                   # one small tile
    if b8 <= 2 * tb_max:
        # Guarantee >= 2 grid steps so dimension_semantics=("parallel",) can
        # shard the batch across both v7x TensorCores, balanced split.
        return _round_up((b8 + 1) // 2, 8)
    return tb_max


def _nbytes(a):
    return a.size * a.dtype.itemsize


def prepare_params(params, compute_dtype=jnp.bfloat16):
    """One-time inference prep (do NOT call per forward): cast weights to the
    MXU compute dtype (bf16 recommended on v6e/v7x); biases stay f32 because
    the in-kernel elementwise math is f32 (v5e has no bf16 VPU/EUP)."""
    out = {}
    for i in (1, 2, 3, 4):
        out[f"w{i}"] = params[f"w{i}"].astype(compute_dtype)
        out[f"b{i}"] = params[f"b{i}"].astype(jnp.float32)
    return out


def discriminator_forward(x, params, *, tb_max=512):
    """Eval-mode forward. x: (B, D) f32. Weights stored (in, out); biases (1, out).
    The MXU compute dtype is taken from the stored weight dtype (see prepare_params);
    no casts or padding copies happen in this wrapper."""
    B, D = x.shape
    w1, w2, w3, w4 = (params[f"w{i}"] for i in (1, 2, 3, 4))
    b1, b2, b3, b4 = (params[f"b{i}"] for i in (1, 2, 3, 4))
    assert w1.shape[0] == D

    tb = _choose_batch_tile(B, tb_max)
    n_tiles = -(-B // tb)   # ceil; trailing partial tile is masked by Pallas

    # ---- VMEM budget: size it, don't max it. --------------------------------
    cdt_bytes = jnp.dtype(w1.dtype).itemsize
    w_bytes = sum(_nbytes(t) for t in (w1, b1, w2, b2, w3, b3, w4, b4))  # single-buffered
    x_tile_bytes = 2 * tb * D * x.dtype.itemsize          # double-buffered input
    out_tile_bytes = 2 * tb * 4                            # double-buffered output
    act_bytes = tb * (512 + 256 + 128) * (4 + cdt_bytes)   # spill headroom for h
    need = w_bytes + x_tile_bytes + out_tile_bytes + act_bytes
    if need > 48 * 1024 * 1024:
        # TODO(synk): add a K-tiled path (grid axis over D for w1) for very large D.
        raise NotImplementedError(
            f"Resident-weight footprint (~{need >> 20} MiB) exceeds the VMEM budget; "
            "K-tiling over the input dimension is not implemented.")
    vmem_limit = min(max(2 * need, 16 * 1024 * 1024), 48 * 1024 * 1024)

    flops = 2 * B * (D * 512 + 512 * 256 + 256 * 128 + 128 * 1)
    bytes_accessed = _nbytes(x) + w_bytes + B * 4
    cost = pl.CostEstimate(flops=flops, transcendentals=B,
                           bytes_accessed=bytes_accessed)

    def const_spec(arr):
        # Block index never changes -> one DMA total; single buffer halves the
        # resident-weight VMEM footprint (matters for large D on v7x).
        return pl.BlockSpec(arr.shape, lambda i: (0, 0),
                            pipeline_mode=pl.Buffered(1))

    out = pl.pallas_call(
        _disc_kernel,
        out_shape=jax.ShapeDtypeStruct((B, 1), jnp.float32),
        grid_spec=pltpu.PrefetchScalarGridSpec(
            num_scalar_prefetch=0,
            grid=(n_tiles,),
            in_specs=[
                pl.BlockSpec((tb, D), lambda i: (i, 0)),   # x batch tile (f32)
                const_spec(w1), const_spec(b1),
                const_spec(w2), const_spec(b2),
                const_spec(w3), const_spec(b3),
                const_spec(w4), const_spec(b4),
            ],
            out_specs=pl.BlockSpec((tb, 1), lambda i: (i, 0)),
        ),
        compiler_params=pltpu.CompilerParams(
            dimension_semantics=("parallel",),
            vmem_limit_bytes=int(vmem_limit),
        ),
        cost_estimate=cost,
    )(x, w1, b1, w2, b2, w3, b3, w4, b4)

    return out  # (B, 1) f32


def init_params(key, output_dim):
    """Deterministic init mirroring torch.nn.Linear default U(-1/sqrt(fan_in), +)."""
    dims = [(output_dim, 512), (512, 256), (256, 128), (128, 1)]
    params = {}
    for idx, (fan_in, fan_out) in enumerate(dims, start=1):
        key, kw, kb = jax.random.split(key, 3)
        bound = 1.0 / (fan_in ** 0.5)
        params[f"w{idx}"] = jax.random.uniform(
            kw, (fan_in, fan_out), jnp.float32, -bound, bound)
        params[f"b{idx}"] = jax.random.uniform(
            kb, (1, fan_out), jnp.float32, -bound, bound)
    return params


def reference_forward(x, params):
    hp = jax.lax.Precision.HIGHEST
    h = x
    for i in (1, 2, 3):
        h = jnp.dot(h, params[f"w{i}"].astype(jnp.float32), precision=hp) + params[f"b{i}"]
        h = jnp.where(h > 0, h, 0.2 * h)
    logits = jnp.dot(h, params["w4"].astype(jnp.float32), precision=hp) + params["b4"]
    return jax.nn.sigmoid(logits)


if __name__ == "__main__":
    key = jax.random.PRNGKey(0)
    k_x1, k_x2, k_p = jax.random.split(key, 3)

    output_dim = 32
    params_f32 = init_params(k_p, output_dim)

    fwd = jax.jit(discriminator_forward)

    # Small batch: single tiny tile (block == full batch dim).
    x_small = jax.random.normal(k_x1, (4, output_dim), jnp.float32)
    out_small = jax.block_until_ready(fwd(x_small, params_f32))
    ref_small = reference_forward(x_small, params_f32)
    assert out_small.shape == (4, 1)
    assert jnp.allclose(out_small, ref_small, atol=1e-3), "f32 mismatch (small batch)"

    # Ragged batch: 2 balanced tiles (tb=152) + masked partial trailing block, no jnp.pad.
    x_big = jax.random.normal(k_x2, (300, output_dim), jnp.float32)
    out_big = jax.block_until_ready(fwd(x_big, params_f32))
    ref_big = reference_forward(x_big, params_f32)
    assert out_big.shape == (300, 1)
    assert jnp.allclose(out_big, ref_big, atol=1e-3), "f32 mismatch (ragged batch)"

    # Recommended serving path on v6e/v7x: bf16 weights prepared ONCE, f32 x
    # cast in-kernel, f32 MXU accumulation.
    params_bf16 = prepare_params(params_f32, jnp.bfloat16)
    out_bf = jax.block_until_ready(fwd(x_big, params_bf16))
    assert out_bf.shape == (300, 1)
    assert jnp.allclose(out_bf, ref_big, atol=5e-2), "bf16 mismatch vs reference"

    print("KERNEL_OK")
</pallas_src>

<mosaic_0001>
module attributes {stable_mosaic.version = 11 : i64} {
  func.func @_disc_kernel(%arg0: i32, %arg1: memref<4x32xf32, #tpu.memory_space<vmem>>, %arg2: memref<32x512xf32, #tpu.memory_space<vmem>>, %arg3: memref<1x512xf32, #tpu.memory_space<vmem>>, %arg4: memref<512x256xf32, #tpu.memory_space<vmem>>, %arg5: memref<1x256xf32, #tpu.memory_space<vmem>>, %arg6: memref<256x128xf32, #tpu.memory_space<vmem>>, %arg7: memref<1x128xf32, #tpu.memory_space<vmem>>, %arg8: memref<128x1xf32, #tpu.memory_space<vmem>>, %arg9: memref<1x1xf32, #tpu.memory_space<vmem>>, %arg10: memref<4x1xf32, #tpu.memory_space<vmem>>) attributes {dimension_semantics = [#tpu.dimension_semantics<parallel>], iteration_bounds = array<i64: 1>, scalar_prefetch = 0 : i64, scratch_operands = 0 : i64, tpu.core_type = #tpu.core_type<tc>, window_params = [{transform_indices = @transform_0, window_bounds = array<i64: 4, 32>}, {pipeline_mode = #tpu.pipeline_mode<synchronous>, transform_indices = @transform_1, window_bounds = array<i64: 32, 512>}, {pipeline_mode = #tpu.pipeline_mode<synchronous>, transform_indices = @transform_2, window_bounds = array<i64: 1, 512>}, {pipeline_mode = #tpu.pipeline_mode<synchronous>, transform_indices = @transform_3, window_bounds = array<i64: 512, 256>}, {pipeline_mode = #tpu.pipeline_mode<synchronous>, transform_indices = @transform_4, window_bounds = array<i64: 1, 256>}, {pipeline_mode = #tpu.pipeline_mode<synchronous>, transform_indices = @transform_5, window_bounds = array<i64: 256, 128>}, {pipeline_mode = #tpu.pipeline_mode<synchronous>, transform_indices = @transform_6, window_bounds = array<i64: 1, 128>}, {pipeline_mode = #tpu.pipeline_mode<synchronous>, transform_indices = @transform_7, window_bounds = array<i64: 128, 1>}, {pipeline_mode = #tpu.pipeline_mode<synchronous>, transform_indices = @transform_8, window_bounds = array<i64: 1, 1>}, {transform_indices = @transform_9, window_bounds = array<i64: 4, 1>}]} {
    %c0 = arith.constant 0 : index
    %c0_0 = arith.constant 0 : index
    %0 = vector.load %arg1[%c0, %c0_0] : memref<4x32xf32, #tpu.memory_space<vmem>>, vector<4x32xf32>
    %c0_1 = arith.constant 0 : index
    %c0_2 = arith.constant 0 : index
    %1 = vector.load %arg2[%c0_1, %c0_2] : memref<32x512xf32, #tpu.memory_space<vmem>>, vector<32x512xf32>
    %cst = arith.constant dense<0.000000e+00> : vector<4x512xf32>
    %2 = tpu.matmul %0, %1, %cst {dimension_numbers = #tpu.dot_dimension_numbers<[1], [0], [0], [1], [0, 0, 1, 1], [], []>} : vector<4x32xf32>, vector<32x512xf32>, vector<4x512xf32> -> vector<4x512xf32>
    %c0_3 = arith.constant 0 : index
    %c0_4 = arith.constant 0 : index
    %3 = vector.load %arg3[%c0_3, %c0_4] : memref<1x512xf32, #tpu.memory_space<vmem>>, vector<1x512xf32>
    %4 = vector.broadcast %3 : vector<1x512xf32> to vector<4x512xf32>
    %5 = arith.addf %2, %4 : vector<4x512xf32>
    %cst_5 = arith.constant 2.000000e-01 : f32
    %6 = vector.broadcast %cst_5 : f32 to vector<4x512xf32>
    %7 = arith.mulf %6, %5 : vector<4x512xf32>
    %8 = arith.maximumf %5, %7 : vector<4x512xf32>
    %c0_6 = arith.constant 0 : index
    %c0_7 = arith.constant 0 : index
    %9 = vector.load %arg4[%c0_6, %c0_7] : memref<512x256xf32, #tpu.memory_space<vmem>>, vector<512x256xf32>
    %cst_8 = arith.constant dense<0.000000e+00> : vector<4x256xf32>
    %10 = tpu.matmul %8, %9, %cst_8 {dimension_numbers = #tpu.dot_dimension_numbers<[1], [0], [0], [1], [0, 0, 1, 1], [], []>} : vector<4x512xf32>, vector<512x256xf32>, vector<4x256xf32> -> vector<4x256xf32>
    %c0_9 = arith.constant 0 : index
    %c0_10 = arith.constant 0 : index
    %11 = vector.load %arg5[%c0_9, %c0_10] : memref<1x256xf32, #tpu.memory_space<vmem>>, vector<1x256xf32>
    %12 = vector.broadcast %11 : vector<1x256xf32> to vector<4x256xf32>
    %13 = arith.addf %10, %12 : vector<4x256xf32>
    %cst_11 = arith.constant 2.000000e-01 : f32
    %14 = vector.broadcast %cst_11 : f32 to vector<4x256xf32>
    %15 = arith.mulf %14, %13 : vector<4x256xf32>
    %16 = arith.maximumf %13, %15 : vector<4x256xf32>
    %c0_12 = arith.constant 0 : index
    %c0_13 = arith.constant 0 : index
    %17 = vector.load %arg6[%c0_12, %c0_13] : memref<256x128xf32, #tpu.memory_space<vmem>>, vector<256x128xf32>
    %cst_14 = arith.constant dense<0.000000e+00> : vector<4x128xf32>
    %18 = tpu.matmul %16, %17, %cst_14 {dimension_numbers = #tpu.dot_dimension_numbers<[1], [0], [0], [1], [0, 0, 1, 1], [], []>} : vector<4x256xf32>, vector<256x128xf32>, vector<4x128xf32> -> vector<4x128xf32>
    %c0_15 = arith.constant 0 : index
    %c0_16 = arith.constant 0 : index
    %19 = vector.load %arg7[%c0_15, %c0_16] : memref<1x128xf32, #tpu.memory_space<vmem>>, vector<1x128xf32>
    %20 = vector.broadcast %19 : vector<1x128xf32> to vector<4x128xf32>
    %21 = arith.addf %18, %20 : vector<4x128xf32>
    %cst_17 = arith.constant 2.000000e-01 : f32
    %22 = vector.broadcast %cst_17 : f32 to vector<4x128xf32>
    %23 = arith.mulf %22, %21 : vector<4x128xf32>
    %24 = arith.maximumf %21, %23 : vector<4x128xf32>
    %c0_18 = arith.constant 0 : index
    %c0_19 = arith.constant 0 : index
    %25 = vector.load %arg8[%c0_18, %c0_19] : memref<128x1xf32, #tpu.memory_space<vmem>>, vector<128x1xf32>
    %cst_20 = arith.constant dense<0.000000e+00> : vector<4x1xf32>
    %26 = tpu.matmul %24, %25, %cst_20 {dimension_numbers = #tpu.dot_dimension_numbers<[1], [0], [0], [1], [0, 0, 1, 1], [], []>} : vector<4x128xf32>, vector<128x1xf32>, vector<4x1xf32> -> vector<4x1xf32>
    %c0_21 = arith.constant 0 : index
    %c0_22 = arith.constant 0 : index
    %27 = vector.load %arg9[%c0_21, %c0_22] : memref<1x1xf32, #tpu.memory_space<vmem>>, vector<1x1xf32>
    %28 = vector.broadcast %27 : vector<1x1xf32> to vector<4x1xf32>
    %29 = arith.addf %26, %28 : vector<4x1xf32>
    %cst_23 = arith.constant 0.000000e+00 : f32
    %30 = vector.broadcast %cst_23 : f32 to vector<4x1xf32>
    %31 = arith.subf %30, %29 : vector<4x1xf32>
    %32 = math.exp %31 : vector<4x1xf32>
    %cst_24 = arith.constant 1.000000e+00 : f32
    %33 = vector.broadcast %cst_24 : f32 to vector<4x1xf32>
    %34 = arith.addf %33, %32 : vector<4x1xf32>
    %35 = tpu.reciprocal %34 : vector<4x1xf32> -> vector<4x1xf32>
    %c0_25 = arith.constant 0 : index
    %c0_26 = arith.constant 0 : index
    %36 = vector.load %arg10[%c0_25, %c0_26] : memref<4x1xf32, #tpu.memory_space<vmem>>, vector<4x1xf32>
    tpu.vector_store %arg10[%c0_25, %c0_26], %35 {strides = array<i32>} : memref<4x1xf32, #tpu.memory_space<vmem>>, vector<4x1xf32>,
    return
  }
  func.func @transform_0(%arg0: i32) -> (i32, i32) {
    %c0_i32 = arith.constant 0 : i32
    %c0_i32_0 = arith.constant 0 : i32
    return %arg0, %c0_i32 : i32, i32
  }
  func.func @transform_1(%arg0: i32) -> (i32, i32) {
    %c0_i32 = arith.constant 0 : i32
    %c0_i32_0 = arith.constant 0 : i32
    %c0_i32_1 = arith.constant 0 : i32
    return %c0_i32, %c0_i32_0 : i32, i32
  }
  func.func @transform_2(%arg0: i32) -> (i32, i32) {
    %c0_i32 = arith.constant 0 : i32
    %c0_i32_0 = arith.constant 0 : i32
    %c0_i32_1 = arith.constant 0 : i32
    return %c0_i32, %c0_i32_0 : i32, i32
  }
  func.func @transform_3(%arg0: i32) -> (i32, i32) {
    %c0_i32 = arith.constant 0 : i32
    %c0_i32_0 = arith.constant 0 : i32
    %c0_i32_1 = arith.constant 0 : i32
    return %c0_i32, %c0_i32_0 : i32, i32
  }
  func.func @transform_4(%arg0: i32) -> (i32, i32) {
    %c0_i32 = arith.constant 0 : i32
    %c0_i32_0 = arith.constant 0 : i32
    %c0_i32_1 = arith.constant 0 : i32
    return %c0_i32, %c0_i32_0 : i32, i32
  }
  func.func @transform_5(%arg0: i32) -> (i32, i32) {
    %c0_i32 = arith.constant 0 : i32
    %c0_i32_0 = arith.constant 0 : i32
    %c0_i32_1 = arith.constant 0 : i32
    return %c0_i32, %c0_i32_0 : i32, i32
  }
  func.func @transform_6(%arg0: i32) -> (i32, i32) {
    %c0_i32 = arith.constant 0 : i32
    %c0_i32_0 = arith.constant 0 : i32
    %c0_i32_1 = arith.constant 0 : i32
    return %c0_i32, %c0_i32_0 : i32, i32
  }
  func.func @transform_7(%arg0: i32) -> (i32, i32) {
    %c0_i32 = arith.constant 0 : i32
    %c0_i32_0 = arith.constant 0 : i32
    %c0_i32_1 = arith.constant 0 : i32
    return %c0_i32, %c0_i32_0 : i32, i32
  }
  func.func @transform_8(%arg0: i32) -> (i32, i32) {
    %c0_i32 = arith.constant 0 : i32
    %c0_i32_0 = arith.constant 0 : i32
    %c0_i32_1 = arith.constant 0 : i32
    return %c0_i32, %c0_i32_0 : i32, i32
  }
  func.func @transform_9(%arg0: i32) -> (i32, i32) {
    %c0_i32 = arith.constant 0 : i32
    %c0_i32_0 = arith.constant 0 : i32
    return %arg0, %c0_i32 : i32, i32
  }
}

</mosaic_0001>

<llo_original>
// kernel: discriminator_forward.1
$region0: #{discriminator_forward.1}
  #allocation0 [shape = 'u32[]', space=smem, size = 0x4, offset = 0x4, fixed_abs, tag = 'smem constant byte address 0x4 - core index']
  #allocation1 [shape = 'u32[144,128]{1,0:T(1,128)}', space=vmem, size = 0x12000, scoped, tag = 'internal scratch']
  #allocation2 [shape = 'f32[1,1]{1,0:T(1,128)S(1)}', space=vmem, size = 0x200, scoped, tag = 'scoped memory for discriminator_forward.1']
  %s0 = inlined_call_operand.vmem [shape: f32[4,32], index: 0, kind: input, shape index: {}]
  %s1 = inlined_call_operand.vmem [shape: f32[32,512], index: 1, kind: input, shape index: {}]
  %s2 = inlined_call_operand.vmem [shape: f32[1,512], index: 2, kind: input, shape index: {}]
  %s3 = inlined_call_operand.hbm [shape: f32[512,256], index: 3, kind: input, shape index: {}]
  %s4 = inlined_call_operand.vmem [shape: f32[1,256], index: 4, kind: input, shape index: {}]
  %s5 = inlined_call_operand.hbm [shape: f32[256,128], index: 5, kind: input, shape index: {}]
  %s6 = inlined_call_operand.vmem [shape: f32[1,128], index: 6, kind: input, shape index: {}]
  %s7 = inlined_call_operand.vmem [shape: f32[128,1], index: 7, kind: input, shape index: {}]
  %s8 = inlined_call_operand.<no memory space> [shape: f32[1,1], index: 8, kind: input, shape index: {}]
  %s9 = inlined_call_operand.vmem [shape: f32[4,1], index: 9, kind: output, shape index: {}]
  %s10 = sld [smem:[#allocation0]]
  $region54: #{discriminator_forward.1} parent=0
    _
  %s12 = ssub.s32 1, %s10
  %s13 = scalar_select 0, %s12, %s10
  %v14 = vstv %s8
  %15 = vst [vmem:[#allocation2] sm:$0x1] %v14
  $region1: #{discriminator_forward.1} parent=0
    #allocation3 [shape = 'u8[524288]{0}', space=vmem, size = 0x80000, scoped, tag = 'input window, operand 3, single buffered']
    #allocation4 [shape = 's32[1]{0}', space=sflag, size = 0x4, scoped, tag = 'scoped memory for discriminator_forward.1']
    #allocation5 [shape = 'u8[131072]{0}', space=vmem, size = 0x20000, scoped, tag = 'input window, operand 5, single buffered']
    #allocation6 [shape = 's32[1]{0}', space=sflag, size = 0x4, scoped, tag = 'scoped memory for discriminator_forward.1']
    %16 = vsyncpa [#allocation4], 0
    %17 = vsyncpa [#allocation6], 0
    // Predicated region
    $region2: #{discriminator_forward.1} parent=1 // pred_check
      _
    $region3: #{discriminator_forward.1} parent=1 // pred_check_branch
      %19 = sbr.rel (0) target = $region5
    $region4: #{discriminator_forward.1} parent=1 // pred_region
      _
    $region5: #{discriminator_forward.1} parent=1 // pred_fallthru
      _
    // Predicated region
    $region6: #{discriminator_forward.1} parent=1 // pred_check
      _
    $region7: #{discriminator_forward.1} parent=1 // pred_check_branch
      %21 = sbr.rel (0) target = $region9
    $region8: #{discriminator_forward.1} parent=1 // pred_region
      _
    $region9: #{discriminator_forward.1} parent=1 // pred_fallthru
      _
    // Predicated region
    $region10: #{discriminator_forward.1} parent=1 // pred_check
      _
    $region11: #{discriminator_forward.1} parent=1 // pred_check_branch
      %23 = sbr.rel (0) target = $region13
    $region12: #{discriminator_forward.1} parent=1 // pred_region
      _
    $region13: #{discriminator_forward.1} parent=1 // pred_fallthru
      _
    // Predicated region
    $region14: #{discriminator_forward.1} parent=1 // pred_check
      _
    $region15: #{discriminator_forward.1} parent=1 // pred_check_branch
      %25 = sbr.rel (0) target = $region17
    $region16: #{discriminator_forward.1} parent=1 // pred_region
      %s27 = ssub.s32 16384, 16384
      %28 = vsyncadd [#allocation4], %s27
      %s29 = sshll.u32 [#allocation3], 4
      %s30 = int_to_ptr.vmem [resolvable:$true] %s29
      %35 = dma.hbm_to_vmem [thread:$0]  %s3, 16384, %s30, [#allocation4], 256, 256, 16
    $region17: #{discriminator_forward.1} parent=1 // pred_fallthru
      _
    // Predicated region
    $region18: #{discriminator_forward.1} parent=1 // pred_check
      _
    $region19: #{discriminator_forward.1} parent=1 // pred_check_branch
      %37 = sbr.rel (0) target = $region21
    $region20: #{discriminator_forward.1} parent=1 // pred_region
      _
    $region21: #{discriminator_forward.1} parent=1 // pred_fallthru
      _
    // Predicated region
    $region22: #{discriminator_forward.1} parent=1 // pred_check
      _
    $region23: #{discriminator_forward.1} parent=1 // pred_check_branch
      %39 = sbr.rel (0) target = $region25
    $region24: #{discriminator_forward.1} parent=1 // pred_region
      %s41 = ssub.s32 4096, 4096
      %42 = vsyncadd [#allocation6], %s41
      %s43 = sshll.u32 [#allocation5], 4
      %s44 = int_to_ptr.vmem [resolvable:$true] %s43
      %49 = dma.hbm_to_vmem [thread:$0]  %s5, 4096, %s44, [#allocation6], 128, 128, 8
    $region25: #{discriminator_forward.1} parent=1 // pred_fallthru
      _
    // Predicated region
    $region26: #{discriminator_forward.1} parent=1 // pred_check
      _
    $region27: #{discriminator_forward.1} parent=1 // pred_check_branch
      %51 = sbr.rel (0) target = $region29
    $region28: #{discriminator_forward.1} parent=1 // pred_region
      _
    $region29: #{discriminator_forward.1} parent=1 // pred_fallthru
      _
    // Predicated region
    $region30: #{discriminator_forward.1} parent=1 // pred_check
      _
    $region31: #{discriminator_forward.1} parent=1 // pred_check_branch
      %53 = sbr.rel (0) target = $region33
    $region32: #{discriminator_forward.1} parent=1 // pred_region
      _
    $region33: #{discriminator_forward.1} parent=1 // pred_fallthru
      _
    // Predicated region
    $region34: #{discriminator_forward.1} parent=1 // pred_check
      _
    $region35: #{discriminator_forward.1} parent=1 // pred_check_branch
      %55 = sbr.rel (0) target = $region37
    $region36: #{discriminator_forward.1} parent=1 // pred_region
      _
    $region37: #{discriminator_forward.1} parent=1 // pred_fallthru
      _
    // Predicated region
    $region38: #{discriminator_forward.1} parent=1 // pred_check
      _
    $region39: #{discriminator_forward.1} parent=1 // pred_check_branch
      %57 = sbr.rel (0) target = $region41
    $region40: #{discriminator_forward.1} parent=1 // pred_region
      %58 = dma.done [#allocation4], 16384
    $region41: #{discriminator_forward.1} parent=1 // pred_fallthru
      _
    // Predicated region
    $region42: #{discriminator_forward.1} parent=1 // pred_check
      _
    $region43: #{discriminator_forward.1} parent=1 // pred_check_branch
      %60 = sbr.rel (0) target = $region45
    $region44: #{discriminator_forward.1} parent=1 // pred_region
      %61 = dma.done [#allocation6], 4096
    $region45: #{discriminator_forward.1} parent=1 // pred_fallthru
      _
    %v62 = vld [vmem:[%s0] sm:$0xf]
    %v63 = vld [vmem:[%s1] sm:$0xff]
    %v64 = vld [vmem:[%s1 + $0x8] sm:$0xff]
    %v65 = vld [vmem:[%s1 + $0x10] sm:$0xff]
    %v66 = vld [vmem:[%s1 + $0x18] sm:$0xff]
    %v67 = vld [vmem:[%s1 + $0x20] sm:$0xff]
    %v68 = vld [vmem:[%s1 + $0x28] sm:$0xff]
    %v69 = vld [vmem:[%s1 + $0x30] sm:$0xff]
    %v70 = vld [vmem:[%s1 + $0x38] sm:$0xff]
    %v71 = vld [vmem:[%s1 + $0x40] sm:$0xff]
    %v72 = vld [vmem:[%s1 + $0x48] sm:$0xff]
    %v73 = vld [vmem:[%s1 + $0x50] sm:$0xff]
    %v74 = vld [vmem:[%s1 + $0x58] sm:$0xff]
    %v75 = vld [vmem:[%s1 + $0x60] sm:$0xff]
    %v76 = vld [vmem:[%s1 + $0x68] sm:$0xff]
    %v77 = vld [vmem:[%s1 + $0x70] sm:$0xff]
    %v78 = vld [vmem:[%s1 + $0x78] sm:$0xff]
    %v79 = vld [vmem:[%s2] sm:$0xf]
    %v81 = vlaneseq
    %v82 = vshrl.u32 %v81, 7
    %v83 = vsub.s32 0, %v82
    %v84 = vrot.slane %v79, %v83
    %v85 = vlaneseq
    %v86 = vshrl.u32 %v85, 7
    %v87 = vsub.s32 1, %v86
    %v88 = vrot.slane %v79, %v87
    %v89 = vlaneseq
    %v90 = vshrl.u32 %v89, 7
    %v91 = vsub.s32 2, %v90
    %v92 = vrot.slane %v79, %v91
    %v93 = vlaneseq
    %v94 = vshrl.u32 %v93, 7
    %v95 = vsub.s32 3, %v94
    %v96 = vrot.slane %v79, %v95
    %vm101 = vcmask 261120
    %v103 = vsel %vm101, %v62, 0
    %105 = vmatprep.subr.mxu0 %v64
    %106 = vmatpush1.msra.mxu0 %v63
    %107 = vmatprep.subr.mxu0 %v68
    %108 = vmatpush1.msra.mxu0 %v67
    %109 = vmatprep.subr.mxu0 %v72
    %110 = vmatpush1.msra.mxu0 %v71
    %111 = vmatprep.subr.mxu0 %v76
    %112 = vmatpush1.msra.mxu0 %v75
    %113 = vmatprep.subr.mxu0 0.0
    %114 = vmatpush1.msra.mxu0 0.0
    %115 = vmatprep.subr.mxu0 0.0
    %116 = vmatpush1.msra.mxu0 0.0
    %117 = vmatprep.subr.mxu0 0.0
    %118 = vmatpush1.msra.mxu0 0.0
    %119 = vmatprep.subr.mxu0 0.0
    %120 = vmatpush1.msra.mxu0 0.0
    %121 = vmatprep.subr.mxu0 0.0
    %122 = vmatpush1.msra.mxu0 0.0
    %123 = vmatprep.subr.mxu0 0.0
    %124 = vmatpush1.msra.mxu0 0.0
    %125 = vmatprep.subr.mxu0 0.0
    %126 = vmatpush1.msra.mxu0 0.0
    %127 = vmatprep.subr.mxu0 0.0
    %128 = vmatpush1.msra.mxu0 0.0
    %129 = vmatprep.subr.mxu0 0.0
    %130 = vmatpush1.msra.mxu0 0.0
    %131 = vmatprep.subr.mxu0 0.0
    %132 = vmatpush1.msra.mxu0 0.0
    %133 = vmatprep.subr.mxu0 0.0
    %134 = vmatpush1.msra.mxu0 0.0
    %135 = vmatprep.subr.mxu0 0.0
    %136 = vmatpush1.msra.mxu0 0.0
    %137 = vmatprep.subr.mxu0 0.0
    %138 = vmatpush1.msra.mxu0 0.0
    %139 = vmatprep.subr.mxu0 0.0
    %140 = vmatpush1.msra.mxu0 0.0
    %141 = vmatprep.subr.mxu0 0.0
    %142 = vmatpush1.msra.mxu0 0.0
    %143 = vmatprep.subr.mxu0 0.0
    %144 = vmatpush1.msra.mxu0 0.0
    %145 = vmatprep.subr.mxu0 0.0
    %146 = vmatpush1.msra.mxu0 0.0
    %147 = vmatprep.subr.mxu0 0.0
    %148 = vmatpush1.msra.mxu0 0.0
    %149 = vmatprep.subr.mxu0 0.0
    %150 = vmatpush1.msra.mxu0 0.0
    %151 = vmatprep.subr.mxu0 0.0
    %152 = vmatpush1.msra.mxu0 0.0
    %153 = vmatprep.subr.mxu0 0.0
    %154 = vmatpush1.msra.mxu0 0.0
    %155 = vmatprep.subr.mxu0 0.0
    %156 = vmatpush1.msra.mxu0 0.0
    %157 = vmatprep.subr.mxu0 0.0
    %158 = vmatpush1.msra.mxu0 0.0
    %159 = vmatprep.subr.mxu0 0.0
    %160 = vmatpush1.msra.mxu0 0.0
    %161 = vmatprep.subr.mxu0 0.0
    %162 = vmatpush1.msra.mxu0 0.0
    %163 = vmatprep.subr.mxu0 0.0
    %164 = vmatpush1.msra.mxu0 0.0
    %165 = vmatprep.subr.mxu0 0.0
    %166 = vmatpush1.msra.mxu0 0.0
    %167 = vmatprep.subr.mxu0 0.0
    %168 = vmatpush1.msra.mxu0 0.0
    %169 = vmatprep.mubr.f32.mxu0 0.0
    %170 = vmatmul.mubr.f32.gmra.mrb[0].mxu0 %v103
    %v171 = vpop.f32.mrb[0].mxu0
    %v172 = vadd.f32 %v84, %v171
    %v173 = vpop.f32.mrb[0].mxu0
    %v174 = vadd.f32 %v88, %v173
    %175 = vdwg.mxu0
    %176 = vmatprep.subr.mxu0 %v66
    %177 = vmatpush1.msra.mxu0 %v65
    %178 = vmatprep.subr.mxu0 %v70
    %179 = vmatpush1.msra.mxu0 %v69
    %180 = vmatprep.subr.mxu0 %v74
    %181 = vmatpush1.msra.mxu0 %v73
    %182 = vmatprep.subr.mxu0 %v78
    %183 = vmatpush1.msra.mxu0 %v77
    %184 = vmatprep.subr.mxu0 0.0
    %185 = vmatpush1.msra.mxu0 0.0
    %186 = vmatprep.subr.mxu0 0.0
    %187 = vmatpush1.msra.mxu0 0.0
    %188 = vmatprep.subr.mxu0 0.0
    %189 = vmatpush1.msra.mxu0 0.0
    %190 = vmatprep.subr.mxu0 0.0
    %191 = vmatpush1.msra.mxu0 0.0
    %192 = vmatprep.subr.mxu0 0.0
    %193 = vmatpush1.msra.mxu0 0.0
    %194 = vmatprep.subr.mxu0 0.0
    %195 = vmatpush1.msra.mxu0 0.0
    %196 = vmatprep.subr.mxu0 0.0
    %197 = vmatpush1.msra.mxu0 0.0
    %198 = vmatprep.subr.mxu0 0.0
    %199 = vmatpush1.msra.mxu0 0.0
    %200 = vmatprep.subr.mxu0 0.0
    %201 = vmatpush1.msra.mxu0 0.0
    %202 = vmatprep.subr.mxu0 0.0
    %203 = vmatpush1.msra.mxu0 0.0
    %204 = vmatprep.subr.mxu0 0.0
    %205 = vmatpush1.msra.mxu0 0.0
    %206 = vmatprep.subr.mxu0 0.0
    %207 = vmatpush1.msra.mxu0 0.0
    %208 = vmatprep.subr.mxu0 0.0
    %209 = vmatpush1.msra.mxu0 0.0
    %210 = vmatprep.subr.mxu0 0.0
    %211 = vmatpush1.msra.mxu0 0.0
    %212 = vmatprep.subr.mxu0 0.0
    %213 = vmatpush1.msra.mxu0 0.0
    %214 = vmatprep.subr.mxu0 0.0
    %215 = vmatpush1.msra.mxu0 0.0
    %216 = vmatprep.subr.mxu0 0.0
    %217 = vmatpush1.msra.mxu0 0.0
    %218 = vmatprep.subr.mxu0 0.0
    %219 = vmatpush1.msra.mxu0 0.0
    %220 = vmatprep.subr.mxu0 0.0
    %221 = vmatpush1.msra.mxu0 0.0
    %222 = vmatprep.subr.mxu0 0.0
    %223 = vmatpush1.msra.mxu0 0.0
    %224 = vmatprep.subr.mxu0 0.0
    %225 = vmatpush1.msra.mxu0 0.0
    %226 = vmatprep.subr.mxu0 0.0
    %227 = vmatpush1.msra.mxu0 0.0
    %228 = vmatprep.subr.mxu0 0.0
    %229 = vmatpush1.msra.mxu0 0.0
    %230 = vmatprep.subr.mxu0 0.0
    %231 = vmatpush1.msra.mxu0 0.0
    %232 = vmatprep.subr.mxu0 0.0
    %233 = vmatpush1.msra.mxu0 0.0
    %234 = vmatprep.subr.mxu0 0.0
    %235 = vmatpush1.msra.mxu0 0.0
    %236 = vmatprep.subr.mxu0 0.0
    %237 = vmatpush1.msra.mxu0 0.0
    %238 = vmatprep.subr.mxu0 0.0
    %239 = vmatpush1.msra.mxu0 0.0
    %240 = vmatprep.mubr.f32.mxu0 0.0
    %241 = vmatmul.mubr.f32.gmra.mrb[0].mxu0 %v103
    %v242 = vpop.f32.mrb[0].mxu0
    %v243 = vadd.f32 %v92, %v242
    %v244 = vpop.f32.mrb[0].mxu0
    %v245 = vadd.f32 %v96, %v244
    %246 = vdwg.mxu0
    %v247 = vmul.f32 %v172, 0.2
    %v248 = vmul.f32 %v174, 0.2
    %v249 = vmul.f32 %v243, 0.2
    %v250 = vmul.f32 %v245, 0.2
    %v251 = vmax.f32 %v172, %v247
    %v252 = vmax.f32 %v174, %v248
    %v253 = vmax.f32 %v243, %v249
    %v254 = vmax.f32 %v245, %v250
    %v255 = vld [vmem:[#allocation3] sm:$0xff]
    %v256 = vld [vmem:[#allocation3 + $0x8] sm:$0xff]
    %v257 = vld [vmem:[#allocation3 + $0x10] sm:$0xff]
    %v258 = vld [vmem:[#allocation3 + $0x18] sm:$0xff]
    %v259 = vld [vmem:[#allocation3 + $0x20] sm:$0xff]
    %v260 = vld [vmem:[#allocation3 + $0x28] sm:$0xff]
    %v261 = vld [vmem:[#allocation3 + $0x30] sm:$0xff]
    %v262 = vld [vmem:[#allocation3 + $0x38] sm:$0xff]
    %v263 = vld [vmem:[#allocation3 + $0x40] sm:$0xff]
    %v264 = vld [vmem:[#allocation3 + $0x48] sm:$0xff]
    %v265 = vld [vmem:[#allocation3 + $0x50] sm:$0xff]
    %v266 = vld [vmem:[#allocation3 + $0x58] sm:$0xff]
    %v267 = vld [vmem:[#allocation3 + $0x60] sm:$0xff]
    %v268 = vld [vmem:[#allocation3 + $0x68] sm:$0xff]
    %v269 = vld [vmem:[#allocation3 + $0x70] sm:$0xff]
    %v270 = vld [vmem:[#allocation3 + $0x78] sm:$0xff]
    %v271 = vld [vmem:[#allocation3 + $0x80] sm:$0xff]
    %v272 = vld [vmem:[#allocation3 + $0x88] sm:$0xff]
    %v273 = vld [vmem:[#allocation3 + $0x90] sm:$0xff]
    %v274 = vld [vmem:[#allocation3 + $0x98] sm:$0xff]
    %v275 = vld [vmem:[#allocation3 + $0xa0] sm:$0xff]
    %v276 = vld [vmem:[#allocation3 + $0xa8] sm:$0xff]
    %v277 = vld [vmem:[#allocation3 + $0xb0] sm:$0xff]
    %v278 = vld [vmem:[#allocation3 + $0xb8] sm:$0xff]
    %v279 = vld [vmem:[#allocation3 + $0xc0] sm:$0xff]
    %v280 = vld [vmem:[#allocation3 + $0xc8] sm:$0xff]
    %v281 = vld [vmem:[#allocation3 + $0xd0] sm:$0xff]
    %v282 = vld [vmem:[#allocation3 + $0xd8] sm:$0xff]
    %v283 = vld [vmem:[#allocation3 + $0xe0] sm:$0xff]
    %v284 = vld [vmem:[#allocation3 + $0xe8] sm:$0xff]
    %v285 = vld [vmem:[#allocation3 + $0xf0] sm:$0xff]
    %v286 = vld [vmem:[#allocation3 + $0xf8] sm:$0xff]
    %v287 = vld [vmem:[#allocation3 + $0x100] sm:$0xff]
    %v288 = vld [vmem:[#allocation3 + $0x108] sm:$0xff]
    %v289 = vld [vmem:[#allocation3 + $0x110] sm:$0xff]
    %v290 = vld [vmem:[#allocation3 + $0x118] sm:$0xff]
    %v291 = vld [vmem:[#allocation3 + $0x120] sm:$0xff]
    %v292 = vld [vmem:[#allocation3 + $0x128] sm:$0xff]
    %v293 = vld [vmem:[#allocation3 + $0x130] sm:$0xff]
    %v294 = vld [vmem:[#allocation3 + $0x138] sm:$0xff]
    %v295 = vld [vmem:[#allocation3 + $0x140] sm:$0xff]
    %v296 = vld [vmem:[#allocation3 + $0x148] sm:$0xff]
    %v297 = vld [vmem:[#allocation3 + $0x150] sm:$0xff]
    %v298 = vld [vmem:[#allocation3 + $0x158] sm:$0xff]
    %v299 = vld [vmem:[#allocation3 + $0x160] sm:$0xff]
    %v300 = vld [vmem:[#allocation3 + $0x168] sm:$0xff]
    %v301 = vld [vmem:[#allocation3 + $0x170] sm:$0xff]
    %v302 = vld [vmem:[#allocation3 + $0x178] sm:$0xff]
    %v303 = vld [vmem:[#allocation3 + $0x180] sm:$0xff]
    %v304 = vld [vmem:[#allocation3 + $0x188] sm:$0xff]
    %v305 = vld [vmem:[#allocation3 + $0x190] sm:$0xff]
    %v306 = vld [vmem:[#allocation3 + $0x198] sm:$0xff]
    %v307 = vld [vmem:[#allocation3 + $0x1a0] sm:$0xff]
    %v308 = vld [vmem:[#allocation3 + $0x1a8] sm:$0xff]
    %v309 = vld [vmem:[#allocation3 + $0x1b0] sm:$0xff]
    %v310 = vld [vmem:[#allocation3 + $0x1b8] sm:$0xff]
    %v311 = vld [vmem:[#allocation3 + $0x1c0] sm:$0xff]
    %v312 = vld [vmem:[#allocation3 + $0x1c8] sm:$0xff]
    %v313 = vld [vmem:[#allocation3 + $0x1d0] sm:$0xff]
    %v314 = vld [vmem:[#allocation3 + $0x1d8] sm:$0xff]
    %v315 = vld [vmem:[#allocation3 + $0x1e0] sm:$0xff]
    %v316 = vld [vmem:[#allocation3 + $0x1e8] sm:$0xff]
    %v317 = vld [vmem:[#allocation3 + $0x1f0] sm:$0xff]
    %v318 = vld [vmem:[#allocation3 + $0x1f8] sm:$0xff]
    %v319 = vld [vmem:[#allocation3 + $0x200] sm:$0xff]
    %v320 = vld [vmem:[#allocation3 + $0x208] sm:$0xff]
    %v321 = vld [vmem:[#allocation3 + $0x210] sm:$0xff]
    %v322 = vld [vmem:[#allocation3 + $0x218] sm:$0xff]
    %v323 = vld [vmem:[#allocation3 + $0x220] sm:$0xff]
    %v324 = vld [vmem:[#allocation3 + $0x228] sm:$0xff]
    %v325 = vld [vmem:[#allocation3 + $0x230] sm:$0xff]
    %v326 = vld [vmem:[#allocation3 + $0x238] sm:$0xff]
    %v327 = vld [vmem:[#allocation3 + $0x240] sm:$0xff]
    %v328 = vld [vmem:[#allocation3 + $0x248] sm:$0xff]
    %v329 = vld [vmem:[#allocation3 + $0x250] sm:$0xff]
    %v330 = vld [vmem:[#allocation3 + $0x258] sm:$0xff]
    %v331 = vld [vmem:[#allocation3 + $0x260] sm:$0xff]
    %v332 = vld [vmem:[#allocation3 + $0x268] sm:$0xff]
    %v333 = vld [vmem:[#allocation3 + $0x270] sm:$0xff]
    %v334 = vld [vmem:[#allocation3 + $0x278] sm:$0xff]
    %v335 = vld [vmem:[#allocation3 + $0x280] sm:$0xff]
    %v336 = vld [vmem:[#allocation3 + $0x288] sm:$0xff]
    %v337 = vld [vmem:[#allocation3 + $0x290] sm:$0xff]
    %v338 = vld [vmem:[#allocation3 + $0x298] sm:$0xff]
    %v339 = vld [vmem:[#allocation3 + $0x2a0] sm:$0xff]
    %v340 = vld [vmem:[#allocation3 + $0x2a8] sm:$0xff]
    %v341 = vld [vmem:[#allocation3 + $0x2b0] sm:$0xff]
    %v342 = vld [vmem:[#allocation3 + $0x2b8] sm:$0xff]
    %v343 = vld [vmem:[#allocation3 + $0x2c0] sm:$0xff]
    %v344 = vld [vmem:[#allocation3 + $0x2c8] sm:$0xff]
    %v345 = vld [vmem:[#allocation3 + $0x2d0] sm:$0xff]
    %v346 = vld [vmem:[#allocation3 + $0x2d8] sm:$0xff]
    %v347 = vld [vmem:[#allocation3 + $0x2e0] sm:$0xff]
    %v348 = vld [vmem:[#allocation3 + $0x2e8] sm:$0xff]
    %v349 = vld [vmem:[#allocation3 + $0x2f0] sm:$0xff]
    %v350 = vld [vmem:[#allocation3 + $0x2f8] sm:$0xff]
    %v351 = vld [vmem:[#allocation3 + $0x300] sm:$0xff]
    %v352 = vld [vmem:[#allocation3 + $0x308] sm:$0xff]
    %v353 = vld [vmem:[#allocation3 + $0x310] sm:$0xff]
    %v354 = vld [vmem:[#allocation3 + $0x318] sm:$0xff]
    %v355 = vld [vmem:[#allocation3 + $0x320] sm:$0xff]
    %v356 = vld [vmem:[#allocation3 + $0x328] sm:$0xff]
    %v357 = vld [vmem:[#allocation3 + $0x330] sm:$0xff]
    %v358 = vld [vmem:[#allocation3 + $0x338] sm:$0xff]
    %v359 = vld [vmem:[#allocation3 + $0x340] sm:$0xff]
    %v360 = vld [vmem:[#allocation3 + $0x348] sm:$0xff]
    %v361 = vld [vmem:[#allocation3 + $0x350] sm:$0xff]
    %v362 = vld [vmem:[#allocation3 + $0x358] sm:$0xff]
    %v363 = vld [vmem:[#allocation3 + $0x360] sm:$0xff]
    %v364 = vld [vmem:[#allocation3 + $0x368] sm:$0xff]
    %v365 = vld [vmem:[#allocation3 + $0x370] sm:$0xff]
    %v366 = vld [vmem:[#allocation3 + $0x378] sm:$0xff]
    %v367 = vld [vmem:[#allocation3 + $0x380] sm:$0xff]
    %v368 = vld [vmem:[#allocation3 + $0x388] sm:$0xff]
    %v369 = vld [vmem:[#allocation3 + $0x390] sm:$0xff]
    %v370 = vld [vmem:[#allocation3 + $0x398] sm:$0xff]
    %v371 = vld [vmem:[#allocation3 + $0x3a0] sm:$0xff]
    %v372 = vld [vmem:[#allocation3 + $0x3a8] sm:$0xff]
    %v373 = vld [vmem:[#allocation3 + $0x3b0] sm:$0xff]
    %v374 = vld [vmem:[#allocation3 + $0x3b8] sm:$0xff]
    %v375 = vld [vmem:[#allocation3 + $0x3c0] sm:$0xff]
    %v376 = vld [vmem:[#allocation3 + $0x3c8] sm:$0xff]
    %v377 = vld [vmem:[#allocation3 + $0x3d0] sm:$0xff]
    %v378 = vld [vmem:[#allocation3 + $0x3d8] sm:$0xff]
    %v379 = vld [vmem:[#allocation3 + $0x3e0] sm:$0xff]
    %v380 = vld [vmem:[#allocation3 + $0x3e8] sm:$0xff]
    %v381 = vld [vmem:[#allocation3 + $0x3f0] sm:$0xff]
    %v382 = vld [vmem:[#allocation3 + $0x3f8] sm:$0xff]
    %v383 = vld [vmem:[%s4] sm:$0x3]
    %v385 = vlaneseq
    %v386 = vshrl.u32 %v385, 7
    %v387 = vsub.s32 0, %v386
    %v388 = vrot.slane %v383, %v387
    %v389 = vlaneseq
    %v390 = vshrl.u32 %v389, 7
    %v391 = vsub.s32 1, %v390
    %v392 = vrot.slane %v383, %v391
    %395 = vmatprep.subr.mxu0 %v256
    %396 = vmatpush1.msra.mxu0 %v255
    %397 = vmatprep.subr.mxu0 %v258
    %398 = vmatpush1.msra.mxu0 %v257
    %399 = vmatprep.subr.mxu0 %v260
    %400 = vmatpush1.msra.mxu0 %v259
    %401 = vmatprep.subr.mxu0 %v262
    %402 = vmatpush1.msra.mxu0 %v261
    %403 = vmatprep.subr.mxu0 %v264
    %404 = vmatpush1.msra.mxu0 %v263
    %405 = vmatprep.subr.mxu0 %v266
    %406 = vmatpush1.msra.mxu0 %v265
    %407 = vmatprep.subr.mxu0 %v268
    %408 = vmatpush1.msra.mxu0 %v267
    %409 = vmatprep.subr.mxu0 %v270
    %410 = vmatpush1.msra.mxu0 %v269
    %411 = vmatprep.subr.mxu0 %v272
    %412 = vmatpush1.msra.mxu0 %v271
    %413 = vmatprep.subr.mxu0 %v274
    %414 = vmatpush1.msra.mxu0 %v273
    %415 = vmatprep.subr.mxu0 %v276
    %416 = vmatpush1.msra.mxu0 %v275
    %417 = vmatprep.subr.mxu0 %v278
    %418 = vmatpush1.msra.mxu0 %v277
    %419 = vmatprep.subr.mxu0 %v280
    %420 = vmatpush1.msra.mxu0 %v279
    %421 = vmatprep.subr.mxu0 %v282
    %422 = vmatpush1.msra.mxu0 %v281
    %423 = vmatprep.subr.mxu0 %v284
    %424 = vmatpush1.msra.mxu0 %v283
    %425 = vmatprep.subr.mxu0 %v286
    %426 = vmatpush1.msra.mxu0 %v285
    %427 = vmatprep.subr.mxu0 %v288
    %428 = vmatpush1.msra.mxu0 %v287
    %429 = vmatprep.subr.mxu0 %v290
    %430 = vmatpush1.msra.mxu0 %v289
    %431 = vmatprep.subr.mxu0 %v292
    %432 = vmatpush1.msra.mxu0 %v291
    %433 = vmatprep.subr.mxu0 %v294
    %434 = vmatpush1.msra.mxu0 %v293
    %435 = vmatprep.subr.mxu0 %v296
    %436 = vmatpush1.msra.mxu0 %v295
    %437 = vmatprep.subr.mxu0 %v298
    %438 = vmatpush1.msra.mxu0 %v297
    %439 = vmatprep.subr.mxu0 %v300
    %440 = vmatpush1.msra.mxu0 %v299
    %441 = vmatprep.subr.mxu0 %v302
    %442 = vmatpush1.msra.mxu0 %v301
    %443 = vmatprep.subr.mxu0 %v304
    %444 = vmatpush1.msra.mxu0 %v303
    %445 = vmatprep.subr.mxu0 %v306
    %446 = vmatpush1.msra.mxu0 %v305
    %447 = vmatprep.subr.mxu0 %v308
    %448 = vmatpush1.msra.mxu0 %v307
    %449 = vmatprep.subr.mxu0 %v310
    %450 = vmatpush1.msra.mxu0 %v309
    %451 = vmatprep.subr.mxu0 %v312
    %452 = vmatpush1.msra.mxu0 %v311
    %453 = vmatprep.subr.mxu0 %v314
    %454 = vmatpush1.msra.mxu0 %v313
    %455 = vmatprep.subr.mxu0 %v316
    %456 = vmatpush1.msra.mxu0 %v315
    %457 = vmatprep.subr.mxu0 %v318
    %458 = vmatpush1.msra.mxu0 %v317
    %459 = vmatprep.mubr.f32.mxu0 %v252
    %460 = vmatmul.mubr.f32.gmra.mrb[0].mxu0 %v251
    %v461 = vpop.f32.mrb[0].mxu0
    %v462 = vadd.f32 %v388, %v461
    %v463 = vpop.f32.mrb[0].mxu0
    %v464 = vadd.f32 %v392, %v463
    %465 = vdwg.mxu0
    %466 = vmatprep.subr.mxu0 %v320
    %467 = vmatpush1.msra.mxu0 %v319
    %468 = vmatprep.subr.mxu0 %v322
    %469 = vmatpush1.msra.mxu0 %v321
    %470 = vmatprep.subr.mxu0 %v324
    %471 = vmatpush1.msra.mxu0 %v323
    %472 = vmatprep.subr.mxu0 %v326
    %473 = vmatpush1.msra.mxu0 %v325
    %474 = vmatprep.subr.mxu0 %v328
    %475 = vmatpush1.msra.mxu0 %v327
    %476 = vmatprep.subr.mxu0 %v330
    %477 = vmatpush1.msra.mxu0 %v329
    %478 = vmatprep.subr.mxu0 %v332
    %479 = vmatpush1.msra.mxu0 %v331
    %480 = vmatprep.subr.mxu0 %v334
    %481 = vmatpush1.msra.mxu0 %v333
    %482 = vmatprep.subr.mxu0 %v336
    %483 = vmatpush1.msra.mxu0 %v335
    %484 = vmatprep.subr.mxu0 %v338
    %485 = vmatpush1.msra.mxu0 %v337
    %486 = vmatprep.subr.mxu0 %v340
    %487 = vmatpush1.msra.mxu0 %v339
    %488 = vmatprep.subr.mxu0 %v342
    %489 = vmatpush1.msra.mxu0 %v341
    %490 = vmatprep.subr.mxu0 %v344
    %491 = vmatpush1.msra.mxu0 %v343
    %492 = vmatprep.subr.mxu0 %v346
    %493 = vmatpush1.msra.mxu0 %v345
    %494 = vmatprep.subr.mxu0 %v348
    %495 = vmatpush1.msra.mxu0 %v347
    %496 = vmatprep.subr.mxu0 %v350
    %497 = vmatpush1.msra.mxu0 %v349
    %498 = vmatprep.subr.mxu0 %v352
    %499 = vmatpush1.msra.mxu0 %v351
    %500 = vmatprep.subr.mxu0 %v354
    %501 = vmatpush1.msra.mxu0 %v353
    %502 = vmatprep.subr.mxu0 %v356
    %503 = vmatpush1.msra.mxu0 %v355
    %504 = vmatprep.subr.mxu0 %v358
    %505 = vmatpush1.msra.mxu0 %v357
    %506 = vmatprep.subr.mxu0 %v360
    %507 = vmatpush1.msra.mxu0 %v359
    %508 = vmatprep.subr.mxu0 %v362
    %509 = vmatpush1.msra.mxu0 %v361
    %510 = vmatprep.subr.mxu0 %v364
    %511 = vmatpush1.msra.mxu0 %v363
    %512 = vmatprep.subr.mxu0 %v366
    %513 = vmatpush1.msra.mxu0 %v365
    %514 = vmatprep.subr.mxu0 %v368
    %515 = vmatpush1.msra.mxu0 %v367
    %516 = vmatprep.subr.mxu0 %v370
    %517 = vmatpush1.msra.mxu0 %v369
    %518 = vmatprep.subr.mxu0 %v372
    %519 = vmatpush1.msra.mxu0 %v371
    %520 = vmatprep.subr.mxu0 %v374
    %521 = vmatpush1.msra.mxu0 %v373
    %522 = vmatprep.subr.mxu0 %v376
    %523 = vmatpush1.msra.mxu0 %v375
    %524 = vmatprep.subr.mxu0 %v378
    %525 = vmatpush1.msra.mxu0 %v377
    %526 = vmatprep.subr.mxu0 %v380
    %527 = vmatpush1.msra.mxu0 %v379
    %528 = vmatprep.subr.mxu0 %v382
    %529 = vmatpush1.msra.mxu0 %v381
    %530 = vmatprep.mubr.f32.mxu0 %v254
    %531 = vmatmul.mubr.f32.gmra.mrb[0].mxu0 %v253
    %v532 = vpop.f32.mrb[0].mxu0
    %v533 = vadd.f32 %v462, %v532
    %v534 = vpop.f32.mrb[0].mxu0
    %v535 = vadd.f32 %v464, %v534
    %536 = vdwg.mxu0
    %v537 = vmul.f32 %v533, 0.2
    %v538 = vmul.f32 %v535, 0.2
    %v539 = vmax.f32 %v533, %v537
    %v540 = vmax.f32 %v535, %v538
    %v541 = vld [vmem:[#allocation5] sm:$0xff]
    %v542 = vld [vmem:[#allocation5 + $0x8] sm:$0xff]
    %v543 = vld [vmem:[#allocation5 + $0x10] sm:$0xff]
    %v544 = vld [vmem:[#allocation5 + $0x18] sm:$0xff]
    %v545 = vld [vmem:[#allocation5 + $0x20] sm:$0xff]
    %v546 = vld [vmem:[#allocation5 + $0x28] sm:$0xff]
    %v547 = vld [vmem:[#allocation5 + $0x30] sm:$0xff]
    %v548 = vld [vmem:[#allocation5 + $0x38] sm:$0xff]
    %v549 = vld [vmem:[#allocation5 + $0x40] sm:$0xff]
    %v550 = vld [vmem:[#allocation5 + $0x48] sm:$0xff]
    %v551 = vld [vmem:[#allocation5 + $0x50] sm:$0xff]
    %v552 = vld [vmem:[#allocation5 + $0x58] sm:$0xff]
    %v553 = vld [vmem:[#allocation5 + $0x60] sm:$0xff]
    %v554 = vld [vmem:[#allocation5 + $0x68] sm:$0xff]
    %v555 = vld [vmem:[#allocation5 + $0x70] sm:$0xff]
    %v556 = vld [vmem:[#allocation5 + $0x78] sm:$0xff]
    %v557 = vld [vmem:[#allocation5 + $0x80] sm:$0xff]
    %v558 = vld [vmem:[#allocation5 + $0x88] sm:$0xff]
    %v559 = vld [vmem:[#allocation5 + $0x90] sm:$0xff]
    %v560 = vld [vmem:[#allocation5 + $0x98] sm:$0xff]
    %v561 = vld [vmem:[#allocation5 + $0xa0] sm:$0xff]
    %v562 = vld [vmem:[#allocation5 + $0xa8] sm:$0xff]
    %v563 = vld [vmem:[#allocation5 + $0xb0] sm:$0xff]
    %v564 = vld [vmem:[#allocation5 + $0xb8] sm:$0xff]
    %v565 = vld [vmem:[#allocation5 + $0xc0] sm:$0xff]
    %v566 = vld [vmem:[#allocation5 + $0xc8] sm:$0xff]
    %v567 = vld [vmem:[#allocation5 + $0xd0] sm:$0xff]
    %v568 = vld [vmem:[#allocation5 + $0xd8] sm:$0xff]
    %v569 = vld [vmem:[#allocation5 + $0xe0] sm:$0xff]
    %v570 = vld [vmem:[#allocation5 + $0xe8] sm:$0xff]
    %v571 = vld [vmem:[#allocation5 + $0xf0] sm:$0xff]
    %v572 = vld [vmem:[#allocation5 + $0xf8] sm:$0xff]
    %v573 = vld [vmem:[%s6] sm:$0x1]
    %v575 = vlaneseq
    %v576 = vshrl.u32 %v575, 7
    %v577 = vsub.s32 0, %v576
    %v578 = vrot.slane %v573, %v577
    %580 = vmatprep.subr.mxu0 0.0
    %581 = vmatpush1.msra.mxu0 %v541
    %582 = vmatprep.subr.mxu0 0.0
    %583 = vmatpush1.msra.mxu0 %v542
    %584 = vmatprep.subr.mxu0 0.0
    %585 = vmatpush1.msra.mxu0 %v543
    %586 = vmatprep.subr.mxu0 0.0
    %587 = vmatpush1.msra.mxu0 %v544
    %588 = vmatprep.subr.mxu0 0.0
    %589 = vmatpush1.msra.mxu0 %v545
    %590 = vmatprep.subr.mxu0 0.0
    %591 = vmatpush1.msra.mxu0 %v546
    %592 = vmatprep.subr.mxu0 0.0
    %593 = vmatpush1.msra.mxu0 %v547
    %594 = vmatprep.subr.mxu0 0.0
    %595 = vmatpush1.msra.mxu0 %v548
    %596 = vmatprep.subr.mxu0 0.0
    %597 = vmatpush1.msra.mxu0 %v549
    %598 = vmatprep.subr.mxu0 0.0
    %599 = vmatpush1.msra.mxu0 %v550
    %600 = vmatprep.subr.mxu0 0.0
    %601 = vmatpush1.msra.mxu0 %v551
    %602 = vmatprep.subr.mxu0 0.0
    %603 = vmatpush1.msra.mxu0 %v552
    %604 = vmatprep.subr.mxu0 0.0
    %605 = vmatpush1.msra.mxu0 %v553
    %606 = vmatprep.subr.mxu0 0.0
    %607 = vmatpush1.msra.mxu0 %v554
    %608 = vmatprep.subr.mxu0 0.0
    %609 = vmatpush1.msra.mxu0 %v555
    %610 = vmatprep.subr.mxu0 0.0
    %611 = vmatpush1.msra.mxu0 %v556
    %612 = vmatprep.subr.mxu0 0.0
    %613 = vmatpush1.msra.mxu0 %v557
    %614 = vmatprep.subr.mxu0 0.0
    %615 = vmatpush1.msra.mxu0 %v558
    %616 = vmatprep.subr.mxu0 0.0
    %617 = vmatpush1.msra.mxu0 %v559
    %618 = vmatprep.subr.mxu0 0.0
    %619 = vmatpush1.msra.mxu0 %v560
    %620 = vmatprep.subr.mxu0 0.0
    %621 = vmatpush1.msra.mxu0 %v561
    %622 = vmatprep.subr.mxu0 0.0
    %623 = vmatpush1.msra.mxu0 %v562
    %624 = vmatprep.subr.mxu0 0.0
    %625 = vmatpush1.msra.mxu0 %v563
    %626 = vmatprep.subr.mxu0 0.0
    %627 = vmatpush1.msra.mxu0 %v564
    %628 = vmatprep.subr.mxu0 0.0
    %629 = vmatpush1.msra.mxu0 %v565
    %630 = vmatprep.subr.mxu0 0.0
    %631 = vmatpush1.msra.mxu0 %v566
    %632 = vmatprep.subr.mxu0 0.0
    %633 = vmatpush1.msra.mxu0 %v567
    %634 = vmatprep.subr.mxu0 0.0
    %635 = vmatpush1.msra.mxu0 %v568
    %636 = vmatprep.subr.mxu0 0.0
    %637 = vmatpush1.msra.mxu0 %v569
    %638 = vmatprep.subr.mxu0 0.0
    %639 = vmatpush1.msra.mxu0 %v570
    %640 = vmatprep.subr.mxu0 0.0
    %641 = vmatpush1.msra.mxu0 %v571
    %642 = vmatprep.subr.mxu0 0.0
    %643 = vmatpush1.msra.mxu0 %v572
    %644 = vmatprep.mubr.f32.mxu0 %v540
    %645 = vmatmul.mubr.f32.gmra.mrb[0].mxu0 %v539
    %v646 = vpop.f32.mrb[0].mxu0
    %v647 = vadd.f32 %v578, %v646
    %v648 = vpop.f32.mrb[0].mxu0
    %649 = vdwg.mxu0
    %v650 = vmul.f32 %v647, 0.2
    %v651 = vmax.f32 %v647, %v650
    %v652 = vld [vmem:[%s7] sm:$0xff]
    %v653 = vld [vmem:[%s7 + $0x8] sm:$0xff]
    %v654 = vld [vmem:[%s7 + $0x10] sm:$0xff]
    %v655 = vld [vmem:[%s7 + $0x18] sm:$0xff]
    %v656 = vld [vmem:[%s7 + $0x20] sm:$0xff]
    %v657 = vld [vmem:[%s7 + $0x28] sm:$0xff]
    %v658 = vld [vmem:[%s7 + $0x30] sm:$0xff]
    %v659 = vld [vmem:[%s7 + $0x38] sm:$0xff]
    %v660 = vld [vmem:[%s7 + $0x40] sm:$0xff]
    %v661 = vld [vmem:[%s7 + $0x48] sm:$0xff]
    %v662 = vld [vmem:[%s7 + $0x50] sm:$0xff]
    %v663 = vld [vmem:[%s7 + $0x58] sm:$0xff]
    %v664 = vld [vmem:[%s7 + $0x60] sm:$0xff]
    %v665 = vld [vmem:[%s7 + $0x68] sm:$0xff]
    %v666 = vld [vmem:[%s7 + $0x70] sm:$0xff]
    %v667 = vld [vmem:[%s7 + $0x78] sm:$0xff]
    %v668 = vld [vmem:[#allocation2] sm:$0x1]
    %v670 = vlaneseq
    %v671 = vshrl.u32 %v670, 7
    %v672 = vsub.s32 0, %v671
    %v673 = vrot.slane %v668, %v672
    %675 = vmatprep.subr.mxu0 0.0
    %676 = vmatpush1.msra.mxu0 %v652
    %677 = vmatprep.subr.mxu0 0.0
    %678 = vmatpush1.msra.mxu0 %v653
    %679 = vmatprep.subr.mxu0 0.0
    %680 = vmatpush1.msra.mxu0 %v654
    %681 = vmatprep.subr.mxu0 0.0
    %682 = vmatpush1.msra.mxu0 %v655
    %683 = vmatprep.subr.mxu0 0.0
    %684 = vmatpush1.msra.mxu0 %v656
    %685 = vmatprep.subr.mxu0 0.0
    %686 = vmatpush1.msra.mxu0 %v657
    %687 = vmatprep.subr.mxu0 0.0
    %688 = vmatpush1.msra.mxu0 %v658
    %689 = vmatprep.subr.mxu0 0.0
    %690 = vmatpush1.msra.mxu0 %v659
    %691 = vmatprep.subr.mxu0 0.0
    %692 = vmatpush1.msra.mxu0 %v660
    %693 = vmatprep.subr.mxu0 0.0
    %694 = vmatpush1.msra.mxu0 %v661
    %695 = vmatprep.subr.mxu0 0.0
    %696 = vmatpush1.msra.mxu0 %v662
    %697 = vmatprep.subr.mxu0 0.0
    %698 = vmatpush1.msra.mxu0 %v663
    %699 = vmatprep.subr.mxu0 0.0
    %700 = vmatpush1.msra.mxu0 %v664
    %701 = vmatprep.subr.mxu0 0.0
    %702 = vmatpush1.msra.mxu0 %v665
    %703 = vmatprep.subr.mxu0 0.0
    %704 = vmatpush1.msra.mxu0 %v666
    %705 = vmatprep.subr.mxu0 0.0
    %706 = vmatpush1.msra.mxu0 %v667
    %707 = vmatprep.subr.mxu0 0.0
    %708 = vmatpush1.msra.mxu0 0.0
    %709 = vmatprep.subr.mxu0 0.0
    %710 = vmatpush1.msra.mxu0 0.0
    %711 = vmatprep.subr.mxu0 0.0
    %712 = vmatpush1.msra.mxu0 0.0
    %713 = vmatprep.subr.mxu0 0.0
    %714 = vmatpush1.msra.mxu0 0.0
    %715 = vmatprep.subr.mxu0 0.0
    %716 = vmatpush1.msra.mxu0 0.0
    %717 = vmatprep.subr.mxu0 0.0
    %718 = vmatpush1.msra.mxu0 0.0
    %719 = vmatprep.subr.mxu0 0.0
    %720 = vmatpush1.msra.mxu0 0.0
    %721 = vmatprep.subr.mxu0 0.0
    %722 = vmatpush1.msra.mxu0 0.0
    %723 = vmatprep.subr.mxu0 0.0
    %724 = vmatpush1.msra.mxu0 0.0
    %725 = vmatprep.subr.mxu0 0.0
    %726 = vmatpush1.msra.mxu0 0.0
    %727 = vmatprep.subr.mxu0 0.0
    %728 = vmatpush1.msra.mxu0 0.0
    %729 = vmatprep.subr.mxu0 0.0
    %730 = vmatpush1.msra.mxu0 0.0
    %731 = vmatprep.subr.mxu0 0.0
    %732 = vmatpush1.msra.mxu0 0.0
    %733 = vmatprep.subr.mxu0 0.0
    %734 = vmatpush1.msra.mxu0 0.0
    %735 = vmatprep.subr.mxu0 0.0
    %736 = vmatpush1.msra.mxu0 0.0
    %737 = vmatprep.subr.mxu0 0.0
    %738 = vmatpush1.msra.mxu0 0.0
    %739 = vmatprep.mubr.f32.mxu0 0.0
    %740 = vmatmul.mubr.f32.gmra.mrb[0].mxu0 %v651
    %v741 = vpop.f32.mrb[0].mxu0
    %v742 = vadd.f32 %v673, %v741
    %v743 = vpop.f32.mrb[0].mxu0
    %744 = vdwg.mxu0
    %v745 = vsub.f32 0.0, %v742
    %v746 = vmul.f32 %v745, 1.442695
    %v747 = vpow.pop %v746
    %v748 = vadd.f32 %v747, 1.0
    %v749 = vrcp.pop %v748
    %vm750 = vcmask 3072
    %751 = vst.msk [vmem:[%s9] sm:$0xf] %vm750, %v749
    // Predicated region
    $region46: #{discriminator_forward.1} parent=1 // pred_check
      _
    $region47: #{discriminator_forward.1} parent=1 // pred_check_branch
      %753 = sbr.rel (0) target = $region49
    $region48: #{discriminator_forward.1} parent=1 // pred_region
      _
    $region49: #{discriminator_forward.1} parent=1 // pred_fallthru
      _
    // Predicated region
    $region50: #{discriminator_forward.1} parent=1 // pred_check
      _
    $region51: #{discriminator_forward.1} parent=1 // pred_check_branch
      %755 = sbr.rel (0) target = $region53
    $region52: #{discriminator_forward.1} parent=1 // pred_region
      _
    $region53: #{discriminator_forward.1} parent=1 // pred_fallthru
      _
    %756 = vsyncpa [#allocation4], 1
    %757 = vsyncpa [#allocation6], 1

</llo_original>
